<compile_context>
chip_gen: v7x
topology: tpu7x:2x2x1
jax: 0.10.0
libtpu: 0.0.40
codegen_flags: <defaults>
</compile_context>

<pallas_src>
import jax
import jax.numpy as jnp
from jax.experimental import pallas as pl
from jax.experimental.pallas import tpu as pltpu


def double_conv_kernel(x_ref, w1_ref, s1_ref, b1_ref, w2_ref, s2_ref, b2_ref,
                       o_ref, xpad_ref, mid_ref):
    """Fused DoubleConv for one batch element.

    x_ref:     (1, H, W*Cin)        input slab (channels innermost on lanes)
    w1_ref:    (3*W*Cin,  W*Cmid)   banded bf16 conv1 weight (kx + W-pad folded)
    s1/b1_ref: (1, W*Cmid)          folded BN1 scale/shift, tiled across W
    w2_ref:    (3*W*Cmid, W*Cout)   banded bf16 conv2 weight
    s2/b2_ref: (1, W*Cout)          folded BN2 scale/shift, tiled across W
    o_ref:     (1, H, W*Cout)       output slab (lane-dense: W*Cout = 128 here)
    xpad_ref:  (H+2, W*Cin)  f32    VMEM staging with zero height-halo rows
    mid_ref:   (H+2, W*Cmid) f32    VMEM intermediate with zero height-halo rows
    """
    H = o_ref.shape[1]

    # Zero ONLY the halo rows (interiors are fully overwritten below).  This
    # runs every iteration so it stays correct when the batch grid axis is
    # sharded across megacore TensorCores (each core has its own scratch).
    zx = jnp.zeros((1, xpad_ref.shape[1]), xpad_ref.dtype)
    zm = jnp.zeros((1, mid_ref.shape[1]), mid_ref.dtype)
    xpad_ref[0:1, :] = zx
    xpad_ref[H + 1:H + 2, :] = zx
    mid_ref[0:1, :] = zm
    mid_ref[H + 1:H + 2, :] = zm

    # Place the input rows in the interior (no HBM-side jnp.pad needed).
    xpad_ref[1:H + 1, :] = x_ref[0]

    def conv_bn_relu(src_ref, w_ref, s_ref, b_ref):
        # 3x3 conv as a single MXU matmul: concatenate the three ky row-bands
        # along K (full-width, lane-aligned loads; the kx taps live inside the
        # banded weight). bf16 operands, f32 accumulation.
        patches = jnp.concatenate(
            [src_ref[ky:ky + H, :] for ky in range(3)], axis=-1)
        acc = jnp.dot(patches.astype(w_ref.dtype), w_ref[...],
                      preferred_element_type=jnp.float32)
        # Folded BatchNorm (eval mode, running stats) + ReLU, kept in f32.
        return jnp.maximum(acc * s_ref[...] + b_ref[...], 0.0)

    y1 = conv_bn_relu(xpad_ref, w1_ref, s1_ref, b1_ref)   # (H, W*Cmid)
    mid_ref[1:H + 1, :] = y1                               # stays in VMEM
    y2 = conv_bn_relu(mid_ref, w2_ref, s2_ref, b2_ref)     # (H, W*Cout)

    # Dropout2d(p=0.2) is the identity in eval mode.
    o_ref[0] = y2.astype(o_ref.dtype)


def band_conv_weights(w, width):
    """Fold the kx taps (and the implicit width zero-padding) of a 3x3 HWIO
    conv weight into a block-banded matrix:

        B[ky*W*Cin + b*Cin + ci, w*Cout + co] = w[ky, b - w + 1, ci, co]
                                                 (0 <= b - w + 1 < 3, else 0)

    so that conv(x) == concat_ky(x_rows[ky:ky+H, :]) @ B, i.e. one matmul with
    K = 3*W*Cin and a lane-dense N = W*Cout.
    """
    kh, kw, cin, cout = w.shape
    banded = sum(
        jnp.einsum("pq,yio->ypiqo",
                   jnp.eye(width, k=1 - kx, dtype=w.dtype), w[:, kx])
        for kx in range(kw))
    return banded.reshape(kh * width * cin, width * cout)


def fold_bn(gamma, beta, running_mean, running_var, eps=1e-5):
    scale = gamma / jnp.sqrt(running_var + eps)
    shift = beta - running_mean * scale
    return scale, shift


def init_double_conv_params(key, in_channels, out_channels):
    ks = jax.random.split(key, 8)
    p = {}
    p["w1"] = 0.1 * jax.random.normal(ks[0], (3, 3, in_channels, out_channels),
                                      jnp.float32)
    p["w2"] = 0.1 * jax.random.normal(ks[1], (3, 3, out_channels, out_channels),
                                      jnp.float32)
    # BatchNorm parameters + running stats (deterministic, nontrivial).
    p["gamma1"] = 1.0 + 0.1 * jax.random.normal(ks[2], (out_channels,), jnp.float32)
    p["beta1"] = 0.1 * jax.random.normal(ks[3], (out_channels,), jnp.float32)
    p["mean1"] = 0.1 * jax.random.normal(ks[4], (out_channels,), jnp.float32)
    p["var1"] = jax.random.uniform(ks[5], (out_channels,), jnp.float32, 0.5, 1.5)
    p["gamma2"] = 1.0 + 0.1 * jax.random.normal(ks[6], (out_channels,), jnp.float32)
    p["beta2"] = 0.1 * jax.random.normal(ks[7], (out_channels,), jnp.float32)
    p["mean2"] = jnp.zeros((out_channels,), jnp.float32)
    p["var2"] = jnp.ones((out_channels,), jnp.float32)
    return p


@jax.jit
def double_conv(x_nchw, params):
    """DoubleConv forward (eval mode). Input/output: NCHW float32."""
    N, Cin, H, W = x_nchw.shape
    Cmid = params["w1"].shape[-1]
    Cout = params["w2"].shape[-1]

    # NCHW -> (N, H, W*Cin): channels innermost; merging the trailing (W, Cin)
    # pair is a free metadata reshape on the XLA side.
    x = jnp.transpose(x_nchw, (0, 2, 3, 1)).reshape(N, H, W * Cin)

    s1, b1 = fold_bn(params["gamma1"], params["beta1"],
                     params["mean1"], params["var1"])
    s2, b2 = fold_bn(params["gamma2"], params["beta2"],
                     params["mean2"], params["var2"])

    # bf16 MXU weights (f32 accumulation in-kernel); BN affine stays in f32.
    w1b = band_conv_weights(params["w1"], W).astype(jnp.bfloat16)
    w2b = band_conv_weights(params["w2"], W).astype(jnp.bfloat16)
    s1t = jnp.tile(s1, W).reshape(1, W * Cmid).astype(jnp.float32)
    b1t = jnp.tile(b1, W).reshape(1, W * Cmid).astype(jnp.float32)
    s2t = jnp.tile(s2, W).reshape(1, W * Cout).astype(jnp.float32)
    b2t = jnp.tile(b2, W).reshape(1, W * Cout).astype(jnp.float32)

    out = pl.pallas_call(
        double_conv_kernel,
        out_shape=jax.ShapeDtypeStruct((N, H, W * Cout), x_nchw.dtype),
        grid=(N,),
        in_specs=[
            pl.BlockSpec((1, H, W * Cin), lambda n: (n, 0, 0)),
            pl.BlockSpec((3 * W * Cin, W * Cmid), lambda n: (0, 0)),
            pl.BlockSpec((1, W * Cmid), lambda n: (0, 0)),
            pl.BlockSpec((1, W * Cmid), lambda n: (0, 0)),
            pl.BlockSpec((3 * W * Cmid, W * Cout), lambda n: (0, 0)),
            pl.BlockSpec((1, W * Cout), lambda n: (0, 0)),
            pl.BlockSpec((1, W * Cout), lambda n: (0, 0)),
        ],
        out_specs=pl.BlockSpec((1, H, W * Cout), lambda n: (n, 0, 0)),
        scratch_shapes=[
            pltpu.VMEM((H + 2, W * Cin), jnp.float32),   # padded input staging
            pltpu.VMEM((H + 2, W * Cmid), jnp.float32),  # fused intermediate
        ],
        compiler_params=pltpu.CompilerParams(
            dimension_semantics=("parallel",)),
    )(x, w1b, s1t, b1t, w2b, s2t, b2t)

    # (N, H, W*Cout) -> NCHW
    return jnp.transpose(out.reshape(N, H, W, Cout), (0, 3, 1, 2))


def _reference(x_nchw, params):
    """Pure-JAX f32 reference (lax conv) for a sanity check."""
    def conv(x, w):  # x NCHW, w HWIO
        return jax.lax.conv_general_dilated(
            x, w, window_strides=(1, 1), padding="SAME",
            dimension_numbers=("NCHW", "HWIO", "NCHW"))

    s1, b1 = fold_bn(params["gamma1"], params["beta1"],
                     params["mean1"], params["var1"])
    s2, b2 = fold_bn(params["gamma2"], params["beta2"],
                     params["mean2"], params["var2"])
    y = jnp.maximum(conv(x_nchw, params["w1"]) * s1[None, :, None, None]
                    + b1[None, :, None, None], 0.0)
    y = jnp.maximum(conv(y, params["w2"]) * s2[None, :, None, None]
                    + b2[None, :, None, None], 0.0)
    return y


if __name__ == "__main__":
    key = jax.random.PRNGKey(0)
    k_x, k_p = jax.random.split(key)

    N, C_in, C_out, H, W = 2, 4, 8, 16, 16
    x = jax.random.normal(k_x, (N, C_in, H, W), jnp.float32)
    params = init_double_conv_params(k_p, C_in, C_out)

    out = double_conv(x, params)
    out = jax.block_until_ready(out)

    ref = _reference(x, params)
    assert out.shape == (N, C_out, H, W)
    # Tolerance accounts for bf16 MXU operands (f32 accumulation).
    assert jnp.allclose(out, ref, rtol=2e-2, atol=3e-2), (
        float(jnp.max(jnp.abs(out - ref))))

    print("KERNEL_OK")
</pallas_src>

<mosaic_0001>
module attributes {stable_mosaic.version = 11 : i64} {
  func.func @double_conv_kernel(%arg0: i32, %arg1: memref<1x16x64xf32, #tpu.memory_space<vmem>>, %arg2: memref<192x128xbf16, #tpu.memory_space<vmem>>, %arg3: memref<1x128xf32, #tpu.memory_space<vmem>>, %arg4: memref<1x128xf32, #tpu.memory_space<vmem>>, %arg5: memref<384x128xbf16, #tpu.memory_space<vmem>>, %arg6: memref<1x128xf32, #tpu.memory_space<vmem>>, %arg7: memref<1x128xf32, #tpu.memory_space<vmem>>, %arg8: memref<1x16x128xf32, #tpu.memory_space<vmem>>, %arg9: memref<18x64xf32, #tpu.memory_space<vmem>>, %arg10: memref<18x128xf32, #tpu.memory_space<vmem>>) attributes {dimension_semantics = [#tpu.dimension_semantics<parallel>], iteration_bounds = array<i64: 2>, scalar_prefetch = 0 : i64, scratch_operands = 2 : i64, tpu.core_type = #tpu.core_type<tc>, window_params = [{transform_indices = @transform_0, window_bounds = array<i64: 1, 16, 64>}, {pipeline_mode = #tpu.pipeline_mode<synchronous>, transform_indices = @transform_1, window_bounds = array<i64: 192, 128>}, {pipeline_mode = #tpu.pipeline_mode<synchronous>, transform_indices = @transform_2, window_bounds = array<i64: 1, 128>}, {pipeline_mode = #tpu.pipeline_mode<synchronous>, transform_indices = @transform_3, window_bounds = array<i64: 1, 128>}, {pipeline_mode = #tpu.pipeline_mode<synchronous>, transform_indices = @transform_4, window_bounds = array<i64: 384, 128>}, {pipeline_mode = #tpu.pipeline_mode<synchronous>, transform_indices = @transform_5, window_bounds = array<i64: 1, 128>}, {pipeline_mode = #tpu.pipeline_mode<synchronous>, transform_indices = @transform_6, window_bounds = array<i64: 1, 128>}, {transform_indices = @transform_7, window_bounds = array<i64: 1, 16, 128>}]} {
    %cst = arith.constant 0.000000e+00 : f32
    %0 = vector.broadcast %cst : f32 to vector<1x64xf32>
    %cst_0 = arith.constant 0.000000e+00 : f32
    %1 = vector.broadcast %cst_0 : f32 to vector<1x128xf32>
    %c0 = arith.constant 0 : index
    %c0_1 = arith.constant 0 : index
    %2 = vector.load %arg9[%c0, %c0_1] : memref<18x64xf32, #tpu.memory_space<vmem>>, vector<1x64xf32>
    tpu.vector_store %arg9[%c0, %c0_1], %0 {strides = array<i32>} : memref<18x64xf32, #tpu.memory_space<vmem>>, vector<1x64xf32>,
    %c17 = arith.constant 17 : index
    %c0_2 = arith.constant 0 : index
    %3 = vector.load %arg9[%c17, %c0_2] : memref<18x64xf32, #tpu.memory_space<vmem>>, vector<1x64xf32>
    tpu.vector_store %arg9[%c17, %c0_2], %0 {strides = array<i32>} : memref<18x64xf32, #tpu.memory_space<vmem>>, vector<1x64xf32>,
    %c0_3 = arith.constant 0 : index
    %c0_4 = arith.constant 0 : index
    %4 = vector.load %arg10[%c0_3, %c0_4] : memref<18x128xf32, #tpu.memory_space<vmem>>, vector<1x128xf32>
    tpu.vector_store %arg10[%c0_3, %c0_4], %1 {strides = array<i32>} : memref<18x128xf32, #tpu.memory_space<vmem>>, vector<1x128xf32>,
    %c17_5 = arith.constant 17 : index
    %c0_6 = arith.constant 0 : index
    %5 = vector.load %arg10[%c17_5, %c0_6] : memref<18x128xf32, #tpu.memory_space<vmem>>, vector<1x128xf32>
    tpu.vector_store %arg10[%c17_5, %c0_6], %1 {strides = array<i32>} : memref<18x128xf32, #tpu.memory_space<vmem>>, vector<1x128xf32>,
    %c0_7 = arith.constant 0 : index
    %c0_8 = arith.constant 0 : index
    %c0_9 = arith.constant 0 : index
    %6 = vector.load %arg1[%c0_7, %c0_8, %c0_9] : memref<1x16x64xf32, #tpu.memory_space<vmem>>, vector<1x16x64xf32>
    %7 = vector.shape_cast %6 : vector<1x16x64xf32> to vector<16x64xf32>
    %c1 = arith.constant 1 : index
    %c0_10 = arith.constant 0 : index
    %8 = vector.load %arg9[%c1, %c0_10] : memref<18x64xf32, #tpu.memory_space<vmem>>, vector<16x64xf32>
    tpu.vector_store %arg9[%c1, %c0_10], %7 {strides = array<i32>} : memref<18x64xf32, #tpu.memory_space<vmem>>, vector<16x64xf32>,
    %c0_11 = arith.constant 0 : index
    %c0_12 = arith.constant 0 : index
    %9 = vector.load %arg9[%c0_11, %c0_12] : memref<18x64xf32, #tpu.memory_space<vmem>>, vector<16x64xf32>
    %c1_13 = arith.constant 1 : index
    %c0_14 = arith.constant 0 : index
    %10 = vector.load %arg9[%c1_13, %c0_14] : memref<18x64xf32, #tpu.memory_space<vmem>>, vector<16x64xf32>
    %c2 = arith.constant 2 : index
    %c0_15 = arith.constant 0 : index
    %11 = vector.load %arg9[%c2, %c0_15] : memref<18x64xf32, #tpu.memory_space<vmem>>, vector<16x64xf32>
    %12 = tpu.concatenate %9, %10, %11 in 1 : vector<16x64xf32>, vector<16x64xf32>, vector<16x64xf32> -> vector<16x192xf32>
    %13 = arith.truncf %12 : vector<16x192xf32> to vector<16x192xbf16>
    %c0_16 = arith.constant 0 : index
    %c0_17 = arith.constant 0 : index
    %14 = vector.load %arg2[%c0_16, %c0_17] : memref<192x128xbf16, #tpu.memory_space<vmem>>, vector<192x128xbf16>
    %cst_18 = arith.constant dense<0.000000e+00> : vector<16x128xf32>
    %15 = tpu.matmul %13, %14, %cst_18 {dimension_numbers = #tpu.dot_dimension_numbers<[1], [0], [0], [1], [0, 0, 1, 1], [], []>} : vector<16x192xbf16>, vector<192x128xbf16>, vector<16x128xf32> -> vector<16x128xf32>
    %c0_19 = arith.constant 0 : index
    %c0_20 = arith.constant 0 : index
    %16 = vector.load %arg3[%c0_19, %c0_20] : memref<1x128xf32, #tpu.memory_space<vmem>>, vector<1x128xf32>
    %17 = vector.broadcast %16 : vector<1x128xf32> to vector<16x128xf32>
    %18 = arith.mulf %15, %17 : vector<16x128xf32>
    %c0_21 = arith.constant 0 : index
    %c0_22 = arith.constant 0 : index
    %19 = vector.load %arg4[%c0_21, %c0_22] : memref<1x128xf32, #tpu.memory_space<vmem>>, vector<1x128xf32>
    %20 = vector.broadcast %19 : vector<1x128xf32> to vector<16x128xf32>
    %21 = arith.addf %18, %20 : vector<16x128xf32>
    %cst_23 = arith.constant 0.000000e+00 : f32
    %22 = vector.broadcast %cst_23 : f32 to vector<16x128xf32>
    %23 = arith.maximumf %21, %22 : vector<16x128xf32>
    %c1_24 = arith.constant 1 : index
    %c0_25 = arith.constant 0 : index
    %24 = vector.load %arg10[%c1_24, %c0_25] : memref<18x128xf32, #tpu.memory_space<vmem>>, vector<16x128xf32>
    tpu.vector_store %arg10[%c1_24, %c0_25], %23 {strides = array<i32>} : memref<18x128xf32, #tpu.memory_space<vmem>>, vector<16x128xf32>,
    %c0_26 = arith.constant 0 : index
    %c0_27 = arith.constant 0 : index
    %25 = vector.load %arg10[%c0_26, %c0_27] : memref<18x128xf32, #tpu.memory_space<vmem>>, vector<16x128xf32>
    %c1_28 = arith.constant 1 : index
    %c0_29 = arith.constant 0 : index
    %26 = vector.load %arg10[%c1_28, %c0_29] : memref<18x128xf32, #tpu.memory_space<vmem>>, vector<16x128xf32>
    %c2_30 = arith.constant 2 : index
    %c0_31 = arith.constant 0 : index
    %27 = vector.load %arg10[%c2_30, %c0_31] : memref<18x128xf32, #tpu.memory_space<vmem>>, vector<16x128xf32>
    %28 = tpu.concatenate %25, %26, %27 in 1 : vector<16x128xf32>, vector<16x128xf32>, vector<16x128xf32> -> vector<16x384xf32>
    %29 = arith.truncf %28 : vector<16x384xf32> to vector<16x384xbf16>
    %c0_32 = arith.constant 0 : index
    %c0_33 = arith.constant 0 : index
    %30 = vector.load %arg5[%c0_32, %c0_33] : memref<384x128xbf16, #tpu.memory_space<vmem>>, vector<384x128xbf16>
    %cst_34 = arith.constant dense<0.000000e+00> : vector<16x128xf32>
    %31 = tpu.matmul %29, %30, %cst_34 {dimension_numbers = #tpu.dot_dimension_numbers<[1], [0], [0], [1], [0, 0, 1, 1], [], []>} : vector<16x384xbf16>, vector<384x128xbf16>, vector<16x128xf32> -> vector<16x128xf32>
    %c0_35 = arith.constant 0 : index
    %c0_36 = arith.constant 0 : index
    %32 = vector.load %arg6[%c0_35, %c0_36] : memref<1x128xf32, #tpu.memory_space<vmem>>, vector<1x128xf32>
    %33 = vector.broadcast %32 : vector<1x128xf32> to vector<16x128xf32>
    %34 = arith.mulf %31, %33 : vector<16x128xf32>
    %c0_37 = arith.constant 0 : index
    %c0_38 = arith.constant 0 : index
    %35 = vector.load %arg7[%c0_37, %c0_38] : memref<1x128xf32, #tpu.memory_space<vmem>>, vector<1x128xf32>
    %36 = vector.broadcast %35 : vector<1x128xf32> to vector<16x128xf32>
    %37 = arith.addf %34, %36 : vector<16x128xf32>
    %cst_39 = arith.constant 0.000000e+00 : f32
    %38 = vector.broadcast %cst_39 : f32 to vector<16x128xf32>
    %39 = arith.maximumf %37, %38 : vector<16x128xf32>
    %c0_40 = arith.constant 0 : index
    %c0_41 = arith.constant 0 : index
    %c0_42 = arith.constant 0 : index
    %40 = vector.load %arg8[%c0_40, %c0_41, %c0_42] : memref<1x16x128xf32, #tpu.memory_space<vmem>>, vector<1x16x128xf32>
    %41 = vector.shape_cast %40 : vector<1x16x128xf32> to vector<16x128xf32>
    %42 = vector.shape_cast %39 : vector<16x128xf32> to vector<1x16x128xf32>
    tpu.vector_store %arg8[%c0_40, %c0_41, %c0_42], %42 {strides = array<i32>} : memref<1x16x128xf32, #tpu.memory_space<vmem>>, vector<1x16x128xf32>,
    return
  }
  func.func @transform_0(%arg0: i32) -> (i32, i32, i32) {
    %c0_i32 = arith.constant 0 : i32
    %c0_i32_0 = arith.constant 0 : i32
    %c0_i32_1 = arith.constant 0 : i32
    return %arg0, %c0_i32, %c0_i32_0 : i32, i32, i32
  }
  func.func @transform_1(%arg0: i32) -> (i32, i32) {
    %c0_i32 = arith.constant 0 : i32
    %c0_i32_0 = arith.constant 0 : i32
    %c0_i32_1 = arith.constant 0 : i32
    return %c0_i32, %c0_i32_0 : i32, i32
  }
  func.func @transform_2(%arg0: i32) -> (i32, i32) {
    %c0_i32 = arith.constant 0 : i32
    %c0_i32_0 = arith.constant 0 : i32
    %c0_i32_1 = arith.constant 0 : i32
    return %c0_i32, %c0_i32_0 : i32, i32
  }
  func.func @transform_3(%arg0: i32) -> (i32, i32) {
    %c0_i32 = arith.constant 0 : i32
    %c0_i32_0 = arith.constant 0 : i32
    %c0_i32_1 = arith.constant 0 : i32
    return %c0_i32, %c0_i32_0 : i32, i32
  }
  func.func @transform_4(%arg0: i32) -> (i32, i32) {
    %c0_i32 = arith.constant 0 : i32
    %c0_i32_0 = arith.constant 0 : i32
    %c0_i32_1 = arith.constant 0 : i32
    return %c0_i32, %c0_i32_0 : i32, i32
  }
  func.func @transform_5(%arg0: i32) -> (i32, i32) {
    %c0_i32 = arith.constant 0 : i32
    %c0_i32_0 = arith.constant 0 : i32
    %c0_i32_1 = arith.constant 0 : i32
    return %c0_i32, %c0_i32_0 : i32, i32
  }
  func.func @transform_6(%arg0: i32) -> (i32, i32) {
    %c0_i32 = arith.constant 0 : i32
    %c0_i32_0 = arith.constant 0 : i32
    %c0_i32_1 = arith.constant 0 : i32
    return %c0_i32, %c0_i32_0 : i32, i32
  }
  func.func @transform_7(%arg0: i32) -> (i32, i32, i32) {
    %c0_i32 = arith.constant 0 : i32
    %c0_i32_0 = arith.constant 0 : i32
    %c0_i32_1 = arith.constant 0 : i32
    return %arg0, %c0_i32, %c0_i32_0 : i32, i32, i32
  }
}

</mosaic_0001>

<llo_original>
// kernel: tile.23
$region0: #{tile.23}
  #allocation0 [shape = 's32[1]{0}', space=sflag, size = 0x4, scoped, tag = 'scoped memory for tile.23']
  %s0 = inlined_call_operand.vmem [shape: f32[8], index: 0, kind: input, shape index: {}]
  %s1 = inlined_call_operand.vmem [shape: f32[16,8], index: 1, kind: output, shape index: {}]
  // Predicated region
  $region2: #{tile.23} parent=0 // pred_check
    _
  $region3: #{tile.23} parent=0 // pred_check_branch
    %3 = sbr.rel (0) target = $region5
  $region4: #{tile.23} parent=0 // pred_region
    _
  $region5: #{tile.23} parent=0 // pred_fallthru
    _
  %v4 = vld [vmem:[%s0] ss:$0 sm:$0xff]
  %5 = vst [vmem:[%s1] sm:$0xff] %v4
  %s6 = scalar_lea.vmem %s1, 8
  %7 = vst [vmem:[%s6] sm:$0xff] %v4

// kernel: tile.24
$region0: #{tile.24}
  %s0 = inlined_call_operand.vmem [shape: f32[16,8], index: 0, kind: input, shape index: {}]
  %s1 = inlined_call_operand.vmem [shape: f32[1,128], index: 1, kind: output, shape index: {}]
  $region1: #{tile.24} parent=0
    #allocation0 [shape = 'u8[4096]{0}', space=vmem, size = 0x1000, scoped, tag = 'scoped mem for output reshape']
    %v2 = vld [vmem:[%s0] sm:$0x1]
    %vm3 = vcmask 64512
    %4 = vst.msk [vmem:[#allocation0] sm:$0x1] %vm3, %v2
    %s5 = scalar_lea.vmem %s0, 15
    %v6 = vld [vmem:[%s5] sm:$0x1]
    %7 = vrot.lane.b32.xlu0 %v6, 120
    %v8 = vpop.permute.xlu0 %7
    %vm9 = vcmask 1048512
    %10 = vst.msk [vmem:[#allocation0] sm:$0x1] %vm9, %v8
    %s11 = scalar_lea.vmem %s0, 14
    %v12 = vld [vmem:[%s11] sm:$0x1]
    %13 = vrot.lane.b32.xlu0 %v12, 112
    %v14 = vpop.permute.xlu0 %13
    %vm15 = vcmask 982912
    %16 = vst.msk [vmem:[#allocation0] sm:$0x1] %vm15, %v14
    %s17 = scalar_lea.vmem %s0, 13
    %v18 = vld [vmem:[%s17] sm:$0x1]
    %19 = vrot.lane.b32.xlu0 %v18, 104
    %v20 = vpop.permute.xlu0 %19
    %vm21 = vcmask 917312
    %22 = vst.msk [vmem:[#allocation0] sm:$0x1] %vm21, %v20
    %s23 = scalar_lea.vmem %s0, 12
    %v24 = vld [vmem:[%s23] sm:$0x1]
    %25 = vrot.lane.b32.xlu0 %v24, 96
    %v26 = vpop.permute.xlu0 %25
    %vm27 = vcmask 851712
    %28 = vst.msk [vmem:[#allocation0] sm:$0x1] %vm27, %v26
    %s29 = scalar_lea.vmem %s0, 11
    %v30 = vld [vmem:[%s29] sm:$0x1]
    %31 = vrot.lane.b32.xlu0 %v30, 88
    %v32 = vpop.permute.xlu0 %31
    %vm33 = vcmask 786112
    %34 = vst.msk [vmem:[#allocation0] sm:$0x1] %vm33, %v32
    %s35 = scalar_lea.vmem %s0, 10
    %v36 = vld [vmem:[%s35] sm:$0x1]
    %37 = vrot.lane.b32.xlu0 %v36, 80
    %v38 = vpop.permute.xlu0 %37
    %vm39 = vcmask 720512
    %40 = vst.msk [vmem:[#allocation0] sm:$0x1] %vm39, %v38
    %s41 = scalar_lea.vmem %s0, 9
    %v42 = vld [vmem:[%s41] sm:$0x1]
    %43 = vrot.lane.b32.xlu0 %v42, 72
    %v44 = vpop.permute.xlu0 %43
    %vm45 = vcmask 654912
    %46 = vst.msk [vmem:[#allocation0] sm:$0x1] %vm45, %v44
    %s47 = scalar_lea.vmem %s0, 8
    %v48 = vld [vmem:[%s47] sm:$0x1]
    %49 = vrot.lane.b32.xlu0 %v48, 64
    %v50 = vpop.permute.xlu0 %49
    %vm51 = vcmask 589312
    %52 = vst.msk [vmem:[#allocation0] sm:$0x1] %vm51, %v50
    %s53 = scalar_lea.vmem %s0, 7
    %v54 = vld [vmem:[%s53] sm:$0x1]
    %55 = vrot.lane.b32.xlu0 %v54, 56
    %v56 = vpop.permute.xlu0 %55
    %vm57 = vcmask 523712
    %58 = vst.msk [vmem:[#allocation0] sm:$0x1] %vm57, %v56
    %s59 = scalar_lea.vmem %s0, 6
    %v60 = vld [vmem:[%s59] sm:$0x1]
    %61 = vrot.lane.b32.xlu0 %v60, 48
    %v62 = vpop.permute.xlu0 %61
    %vm63 = vcmask 458112
    %64 = vst.msk [vmem:[#allocation0] sm:$0x1] %vm63, %v62
    %s65 = scalar_lea.vmem %s0, 5
    %v66 = vld [vmem:[%s65] sm:$0x1]
    %67 = vrot.lane.b32.xlu0 %v66, 40
    %v68 = vpop.permute.xlu0 %67
    %vm69 = vcmask 392512
    %70 = vst.msk [vmem:[#allocation0] sm:$0x1] %vm69, %v68
    %s71 = scalar_lea.vmem %s0, 4
    %v72 = vld [vmem:[%s71] sm:$0x1]
    %73 = vrot.lane.b32.xlu0 %v72, 32
    %v74 = vpop.permute.xlu0 %73
    %vm75 = vcmask 326912
    %76 = vst.msk [vmem:[#allocation0] sm:$0x1] %vm75, %v74
    %s77 = scalar_lea.vmem %s0, 3
    %v78 = vld [vmem:[%s77] sm:$0x1]
    %79 = vrot.lane.b32.xlu0 %v78, 24
    %v80 = vpop.permute.xlu0 %79
    %vm81 = vcmask 261312
    %82 = vst.msk [vmem:[#allocation0] sm:$0x1] %vm81, %v80
    %s83 = scalar_lea.vmem %s0, 2
    %v84 = vld [vmem:[%s83] sm:$0x1]
    %85 = vrot.lane.b32.xlu0 %v84, 16
    %v86 = vpop.permute.xlu0 %85
    %vm87 = vcmask 195712
    %88 = vst.msk [vmem:[#allocation0] sm:$0x1] %vm87, %v86
    %s89 = scalar_lea.vmem %s0, 1
    %v90 = vld [vmem:[%s89] sm:$0x1]
    %91 = vrot.lane.b32.xlu0 %v90, 8
    %v92 = vpop.permute.xlu0 %91
    %vm93 = vcmask 130112
    %94 = vst.msk [vmem:[#allocation0] sm:$0x1] %vm93, %v92
    %s96 = sshllo.u32 0, 1
    %v98 = vld [vmem:[#allocation0] sm:%s96]
    %s99 = sshllo.u32 0, 1
    %100 = vst [vmem:[%s1] sm:%s99] %v98

// kernel: double_conv.1
$region0: #{double_conv.1}
  #allocation0 [shape = 'u32[]', space=smem, size = 0x4, offset = 0x4, fixed_abs, tag = 'smem constant byte address 0x4 - core index']
  #allocation1 [shape = 'u32[144,128]{1,0:T(1,128)}', space=vmem, size = 0x12000, scoped, tag = 'internal scratch']
  #allocation2 [shape = 'f32[18,64]{1,0:T(8,128)}', space=vmem, size = 0x3000, scoped, tag = 'scratch operand']
  #allocation3 [shape = 'f32[18,128]{1,0:T(8,128)}', space=vmem, size = 0x3000, scoped, tag = 'scratch operand']
  %s0 = inlined_call_operand.vmem [shape: f32[2,16,64], index: 0, kind: input, shape index: {}]
  %s1 = inlined_call_operand.vmem [shape: bf16[192,128], index: 1, kind: input, shape index: {}]
  %s2 = inlined_call_operand.vmem [shape: f32[1,128], index: 2, kind: input, shape index: {}]
  %s3 = inlined_call_operand.vmem [shape: f32[1,128], index: 3, kind: input, shape index: {}]
  %s4 = inlined_call_operand.vmem [shape: bf16[384,128], index: 4, kind: input, shape index: {}]
  %s5 = inlined_call_operand.vmem [shape: f32[1,128], index: 5, kind: input, shape index: {}]
  %s6 = inlined_call_operand.vmem [shape: f32[1,128], index: 6, kind: input, shape index: {}]
  %s7 = inlined_call_operand.vmem [shape: f32[2,16,128], index: 7, kind: output, shape index: {}]
  %s8 = sld [smem:[#allocation0]]
  $region61: #{double_conv.1} parent=0
    _
  %s10 = ssub.s32 1, %s8
  %s11 = scalar_select 0, %s10, %s8
  loop: start=0, step=1, limit=4
  $region2: #{double_conv.1} parent=0 // loop_pre_header
    _
  $region3: #{double_conv.1} parent=0 // loop_header
    %s13 = sphi 0, %s17
    %p14 = scmp.ge.s32.totalorder %s13, 4
    %s23 = sphi 0, %s25
    %s26 = sphi 0, %s23
    %s27 = sphi 0, %s26
    %s43 = sphi 0, %s27
    %s47 = sphi 0, %s47
    %s49 = sphi 0, %s47
    %s50 = sphi 0, %s49
    %s64 = sphi 0, %s50
    %s68 = sphi 0, %s68
    %s70 = sphi 0, %s68
    %s71 = sphi 0, %s70
    %s85 = sphi 0, %s71
    %s89 = sphi 0, %s89
    %s91 = sphi 0, %s89
    %s92 = sphi 0, %s91
    %s106 = sphi 0, %s92
    %s110 = sphi 0, %s110
    %s112 = sphi 0, %s110
    %s113 = sphi 0, %s112
    %s127 = sphi 0, %s113
    %s131 = sphi 0, %s131
    %s133 = sphi 0, %s131
    %s134 = sphi 0, %s133
    %s148 = sphi 0, %s134
    %s152 = sphi 0, %s152
    %s154 = sphi 0, %s152
    %s155 = sphi 0, %s154
    %s169 = sphi 0, %s155
    %s175 = sphi 0, %s177
    %s178 = sphi 0, %s175
    %s179 = sphi 0, %s178
    %s195 = sphi 0, %s179
  $region4: #{double_conv.1} parent=0 // loop_header_branch
    %16 = sbr.rel (%p14) target = $region8
  $region5: #{double_conv.1} parent=0 // loop_body
    %s18 = ssub.s32 %s13, 1
    %s19 = ssub.s32 %s13, 2
    %s20 = sadd.s32 %s13, 1
    %s21 = ssub.s32 %s13, %s20
    %p22 = scmp.eq.s32.totalorder %s21, 0
    %s24 = sadd.s32 %s23, 1
    %s25 = scalar_select %p22, %s23, %s24
    %p28 = pneg %p22
    %p29 = scmp.eq.s32.totalorder %s13, 1
    %p30 = por %p28, %p29
    %p31 = scmp.ne.s32.totalorder %s23, %s26
    %p32 = scmp.eq.s32.totalorder %s13, 0
    %p33 = por %p31, %p32
    %p34 = scmp.ne.s32.totalorder %s23, %s26
    %p35 = scmp.eq.s32.totalorder %s18, 1
    %p36 = por %p34, %p35
    %p37 = scmp.ne.s32.totalorder %s26, %s27
    %p38 = scmp.eq.s32.totalorder %s18, 0
    %p39 = por %p37, %p38
    %p40 = scmp.ne.s32.totalorder %s26, %s27
    %p41 = scmp.eq.s32.totalorder %s19, 1
    %p42 = por %p40, %p41
    %p44 = scmp.ne.s32.totalorder %s27, %s43
    %p45 = scmp.eq.s32.totalorder %s19, 0
    %p46 = por %p44, %p45
    %s48 = sadd.s32 %s47, 1
    %p51 = scmp.eq.s32.totalorder %s13, 1
    %p52 = scmp.ne.s32.totalorder %s47, %s49
    %p53 = scmp.eq.s32.totalorder %s13, 0
    %p54 = por %p52, %p53
    %p55 = scmp.ne.s32.totalorder %s47, %s49
    %p56 = scmp.eq.s32.totalorder %s18, 1
    %p57 = por %p55, %p56
    %p58 = scmp.ne.s32.totalorder %s49, %s50
    %p59 = scmp.eq.s32.totalorder %s18, 0
    %p60 = por %p58, %p59
    %p61 = scmp.ne.s32.totalorder %s49, %s50
    %p62 = scmp.eq.s32.totalorder %s19, 1
    %p63 = por %p61, %p62
    %p65 = scmp.ne.s32.totalorder %s50, %s64
    %p66 = scmp.eq.s32.totalorder %s19, 0
    %p67 = por %p65, %p66
    %s69 = sadd.s32 %s68, 1
    %p72 = scmp.eq.s32.totalorder %s13, 1
    %p73 = scmp.ne.s32.totalorder %s68, %s70
    %p74 = scmp.eq.s32.totalorder %s13, 0
    %p75 = por %p73, %p74
    %p76 = scmp.ne.s32.totalorder %s68, %s70
    %p77 = scmp.eq.s32.totalorder %s18, 1
    %p78 = por %p76, %p77
    %p79 = scmp.ne.s32.totalorder %s70, %s71
    %p80 = scmp.eq.s32.totalorder %s18, 0
    %p81 = por %p79, %p80
    %p82 = scmp.ne.s32.totalorder %s70, %s71
    %p83 = scmp.eq.s32.totalorder %s19, 1
    %p84 = por %p82, %p83
    %p86 = scmp.ne.s32.totalorder %s71, %s85
    %p87 = scmp.eq.s32.totalorder %s19, 0
    %p88 = por %p86, %p87
    %s90 = sadd.s32 %s89, 1
    %p93 = scmp.eq.s32.totalorder %s13, 1
    %p94 = scmp.ne.s32.totalorder %s89, %s91
    %p95 = scmp.eq.s32.totalorder %s13, 0
    %p96 = por %p94, %p95
    %p97 = scmp.ne.s32.totalorder %s89, %s91
    %p98 = scmp.eq.s32.totalorder %s18, 1
    %p99 = por %p97, %p98
    %p100 = scmp.ne.s32.totalorder %s91, %s92
    %p101 = scmp.eq.s32.totalorder %s18, 0
    %p102 = por %p100, %p101
    %p103 = scmp.ne.s32.totalorder %s91, %s92
    %p104 = scmp.eq.s32.totalorder %s19, 1
    %p105 = por %p103, %p104
    %p107 = scmp.ne.s32.totalorder %s92, %s106
    %p108 = scmp.eq.s32.totalorder %s19, 0
    %p109 = por %p107, %p108
    %s111 = sadd.s32 %s110, 1
    %p114 = scmp.eq.s32.totalorder %s13, 1
    %p115 = scmp.ne.s32.totalorder %s110, %s112
    %p116 = scmp.eq.s32.totalorder %s13, 0
    %p117 = por %p115, %p116
    %p118 = scmp.ne.s32.totalorder %s110, %s112
    %p119 = scmp.eq.s32.totalorder %s18, 1
    %p120 = por %p118, %p119
    %p121 = scmp.ne.s32.totalorder %s112, %s113
    %p122 = scmp.eq.s32.totalorder %s18, 0
    %p123 = por %p121, %p122
    %p124 = scmp.ne.s32.totalorder %s112, %s113
    %p125 = scmp.eq.s32.totalorder %s19, 1
    %p126 = por %p124, %p125
    %p128 = scmp.ne.s32.totalorder %s113, %s127
    %p129 = scmp.eq.s32.totalorder %s19, 0
    %p130 = por %p128, %p129
    %s132 = sadd.s32 %s131, 1
    %p135 = scmp.eq.s32.totalorder %s13, 1
    %p136 = scmp.ne.s32.totalorder %s131, %s133
    %p137 = scmp.eq.s32.totalorder %s13, 0
    %p138 = por %p136, %p137
    %p139 = scmp.ne.s32.totalorder %s131, %s133
    %p140 = scmp.eq.s32.totalorder %s18, 1
    %p141 = por %p139, %p140
    %p142 = scmp.ne.s32.totalorder %s133, %s134
    %p143 = scmp.eq.s32.totalorder %s18, 0
    %p144 = por %p142, %p143
    %p145 = scmp.ne.s32.totalorder %s133, %s134
    %p146 = scmp.eq.s32.totalorder %s19, 1
    %p147 = por %p145, %p146
    %p149 = scmp.ne.s32.totalorder %s134, %s148
    %p150 = scmp.eq.s32.totalorder %s19, 0
    %p151 = por %p149, %p150
    %s153 = sadd.s32 %s152, 1
    %p156 = scmp.eq.s32.totalorder %s13, 1
    %p157 = scmp.ne.s32.totalorder %s152, %s154
    %p158 = scmp.eq.s32.totalorder %s13, 0
    %p159 = por %p157, %p158
    %p160 = scmp.ne.s32.totalorder %s152, %s154
    %p161 = scmp.eq.s32.totalorder %s18, 1
    %p162 = por %p160, %p161
    %p163 = scmp.ne.s32.totalorder %s154, %s155
    %p164 = scmp.eq.s32.totalorder %s18, 0
    %p165 = por %p163, %p164
    %p166 = scmp.ne.s32.totalorder %s154, %s155
    %p167 = scmp.eq.s32.totalorder %s19, 1
    %p168 = por %p166, %p167
    %p170 = scmp.ne.s32.totalorder %s155, %s169
    %p171 = scmp.eq.s32.totalorder %s19, 0
    %p172 = por %p170, %p171
    %s173 = ssub.s32 %s13, %s20
    %p174 = scmp.eq.s32.totalorder %s173, 0
    %s176 = sadd.s32 %s175, 1
    %s177 = scalar_select %p174, %s175, %s176
    %p180 = pneg %p174
    %p181 = scmp.eq.s32.totalorder %s13, 1
    %p182 = por %p180, %p181
    %p183 = scmp.ne.s32.totalorder %s175, %s178
    %p184 = scmp.eq.s32.totalorder %s13, 0
    %p185 = por %p183, %p184
    %p186 = scmp.ne.s32.totalorder %s175, %s178
    %p187 = scmp.eq.s32.totalorder %s18, 1
    %p188 = por %p186, %p187
    %p189 = scmp.ne.s32.totalorder %s178, %s179
    %p190 = scmp.eq.s32.totalorder %s18, 0
    %p191 = por %p189, %p190
    %p192 = scmp.ne.s32.totalorder %s178, %s179
    %p193 = scmp.eq.s32.totalorder %s19, 1
    %p194 = por %p192, %p193
    %p196 = scmp.ne.s32.totalorder %s179, %s195
    %p197 = scmp.eq.s32.totalorder %s19, 0
    %p198 = por %p196, %p197
    %p199 = scmp.le.s32.totalorder 1, %s13
    %p200 = scmp.lt.s32.totalorder %s13, 3
    %p201 = pnand %p199, %p200
    %p202 = pneg %p201
    // Predicated region
    $region9: #{double_conv.1} parent=5 // pred_check
      _
    $region10: #{double_conv.1} parent=5 // pred_check_branch
      %204 = sbr.rel (%p201) target = $region12
    $region11: #{double_conv.1} parent=5 // pred_region
      %s205 = ssub.s32 %s13, 1
      // Predicated region
      $region13: #{double_conv.1} parent=11 // pred_check
        %p206 = pneg %p60
      $region14: #{double_conv.1} parent=11 // pred_check_branch
        %208 = sbr.rel (%p206) target = $region16
      $region15: #{double_conv.1} parent=11 // pred_region
        _
      $region16: #{double_conv.1} parent=11 // pred_fallthru
        _
      // Predicated region
      $region17: #{double_conv.1} parent=11 // pred_check
        %p209 = pneg %p81
      $region18: #{double_conv.1} parent=11 // pred_check_branch
        %211 = sbr.rel (%p209) target = $region20
      $region19: #{double_conv.1} parent=11 // pred_region
        _
      $region20: #{double_conv.1} parent=11 // pred_fallthru
        _
      // Predicated region
      $region21: #{double_conv.1} parent=11 // pred_check
        %p212 = pneg %p102
      $region22: #{double_conv.1} parent=11 // pred_check_branch
        %214 = sbr.rel (%p212) target = $region24
      $region23: #{double_conv.1} parent=11 // pred_region
        _
      $region24: #{double_conv.1} parent=11 // pred_fallthru
        _
      // Predicated region
      $region25: #{double_conv.1} parent=11 // pred_check
        %p215 = pneg %p123
      $region26: #{double_conv.1} parent=11 // pred_check_branch
        %217 = sbr.rel (%p215) target = $region28
      $region27: #{double_conv.1} parent=11 // pred_region
        _
      $region28: #{double_conv.1} parent=11 // pred_fallthru
        _
      // Predicated region
      $region29: #{double_conv.1} parent=11 // pred_check
        %p218 = pneg %p144
      $region30: #{double_conv.1} parent=11 // pred_check_branch
        %220 = sbr.rel (%p218) target = $region32
      $region31: #{double_conv.1} parent=11 // pred_region
        _
      $region32: #{double_conv.1} parent=11 // pred_fallthru
        _
      // Predicated region
      $region33: #{double_conv.1} parent=11 // pred_check
        %p221 = pneg %p165
      $region34: #{double_conv.1} parent=11 // pred_check_branch
        %223 = sbr.rel (%p221) target = $region36
      $region35: #{double_conv.1} parent=11 // pred_region
        _
      $region36: #{double_conv.1} parent=11 // pred_fallthru
        _
    $region12: #{double_conv.1} parent=5 // pred_fallthru
      _
    %p224 = scmp.lt.s32.totalorder %s13, 2
    // Predicated region
    $region37: #{double_conv.1} parent=5 // pred_check
      %p225 = pneg %p224
    $region38: #{double_conv.1} parent=5 // pred_check_branch
      %227 = sbr.rel (%p225) target = $region40
    $region39: #{double_conv.1} parent=5 // pred_region
      // Predicated region
      $region41: #{double_conv.1} parent=39 // pred_check
        %p228 = pneg %p33
      $region42: #{double_conv.1} parent=39 // pred_check_branch
        %230 = sbr.rel (%p228) target = $region44
      $region43: #{double_conv.1} parent=39 // pred_region
        %p231 = scmp.lt.s32.totalorder %s13, 1
        %s232 = scalar_select %p231, %s13, 1
        %s233 = smul.addr %s232, 2
        %s234 = smul.addr %s233, 8
        %s235 = scalar_lea.vmem %s0, %s234
      $region44: #{double_conv.1} parent=39 // pred_fallthru
        _
    $region40: #{double_conv.1} parent=5 // pred_fallthru
      _
    %p236 = scmp.le.s32.totalorder 1, %s13
    %p237 = scmp.lt.s32.totalorder %s13, 3
    %p238 = pnand %p236, %p237
    %p239 = pneg %p238
    // Predicated region
    $region45: #{double_conv.1} parent=5 // pred_check
      _
    $region46: #{double_conv.1} parent=5 // pred_check_branch
      %241 = sbr.rel (%p238) target = $region48
    $region47: #{double_conv.1} parent=5 // pred_region
      %s242 = ssub.s32 %s13, 1
      %p243 = scmp.lt.s32.totalorder %s18, 1
      %s244 = scalar_select %p243, %s18, 1
      %s245 = smul.addr %s244, 2
      %s246 = smul.addr %s245, 8
      %s247 = scalar_lea.vmem %s0, %s246
      %p248 = pneg %p39
      %p249 = pneg %p36
      %p250 = pneg %p60
      %p251 = pneg %p57
      %p252 = pneg %p81
      %p253 = pneg %p78
      %p254 = pneg %p102
      %p255 = pneg %p99
      %p256 = pneg %p123
      %p257 = pneg %p120
      %p258 = pneg %p144
      %p259 = pneg %p141
      %p260 = pneg %p165
      %p261 = pneg %p162
      %p262 = pneg %p191
      %p263 = pneg %p188
      %p264 = scmp.lt.s32.totalorder %s18, 1
      %s265 = scalar_select %p264, %s18, 1
      %s266 = smul.addr %s265, 2
      %s267 = smul.addr %s266, 8
      %s268 = scalar_lea.vmem %s7, %s267
      %p269 = scmp.lt.s32.totalorder %s18, 1
      %s270 = scalar_select %p269, %s18, 1
      %s271 = smul.addr %s270, 2
      %s272 = smul.addr %s271, 8
      %s273 = scalar_lea.vmem %s0, %s272
      %p274 = scmp.lt.s32.totalorder %s18, 1
      %s275 = scalar_select %p274, %s18, 1
      %s276 = smul.addr %s275, 2
      %s277 = smul.addr %s276, 8
      %s278 = scalar_lea.vmem %s7, %s277
      %vm280 = vcmask 516096
      %281 = vst.msk [vmem:[#allocation2] sm:$0x1] %vm280, 0.0
      %282 = vst.msk [vmem:[#allocation2 + $0x11] sm:$0x1] %vm280, 0.0
      %283 = vst [vmem:[#allocation3] sm:$0x1] 0.0
      %284 = vst [vmem:[#allocation3 + $0x11] sm:$0x1] 0.0
      %v285 = vld [vmem:[%s273] sm:$0xff]
      %v286 = vld [vmem:[%s273 + $0x8] sm:$0xff]
      %vm287 = vcmask 523264
      %288 = vst.msk [vmem:[#allocation2 + $0x1] sm:$0xff] %vm287, %v285
      %289 = vst.msk [vmem:[#allocation2 + $0x9] sm:$0xff] %vm287, %v286
      %v290 = vld [vmem:[#allocation2] sm:$0xff]
      %v291 = vld [vmem:[#allocation2 + $0x8] sm:$0xff]
      %v292 = vld [vmem:[#allocation2 + $0x1] sm:$0xff]
      %v293 = vld [vmem:[#allocation2 + $0x9] sm:$0xff]
      %v294 = vld [vmem:[#allocation2 + $0x2] sm:$0xff]
      %v295 = vld [vmem:[#allocation2 + $0xa] sm:$0xff]
      %298 = vrot.lane.b32.xlu0 %v292, 64
      %v299 = vpop.permute.xlu0 %298
      %300 = vrot.lane.b32.xlu0 %v293, 64
      %v301 = vpop.permute.xlu0 %300
      %v304 = vsel %vm287, %v290, %v299
      %v305 = vsel %vm287, %v291, %v301
      %v306 = vpack.c.bf16 %v305, %v304
      %v307 = vpack.c.bf16 %v295, %v294
      %v308 = vld [vmem:[%s1] sm:$0xf]
      %v309 = vld [vmem:[%s1 + $0x4] sm:$0xf]
      %v310 = vld [vmem:[%s1 + $0x8] sm:$0xf]
      %v311 = vld [vmem:[%s1 + $0xc] sm:$0xf]
      %v312 = vld [vmem:[%s1 + $0x10] sm:$0xf]
      %v313 = vld [vmem:[%s1 + $0x14] sm:$0xf]
      %v314 = vld [vmem:[%s1 + $0x18] sm:$0xf]
      %v315 = vld [vmem:[%s1 + $0x1c] sm:$0xf]
      %v316 = vld [vmem:[%s1 + $0x20] sm:$0xf]
      %v317 = vld [vmem:[%s1 + $0x24] sm:$0xf]
      %v318 = vld [vmem:[%s1 + $0x28] sm:$0xf]
      %v319 = vld [vmem:[%s1 + $0x2c] sm:$0xf]
      %v320 = vld [vmem:[%s1 + $0x30] sm:$0xf]
      %v321 = vld [vmem:[%s1 + $0x34] sm:$0xf]
      %v322 = vld [vmem:[%s1 + $0x38] sm:$0xf]
      %v323 = vld [vmem:[%s1 + $0x3c] sm:$0xf]
      %v324 = vld [vmem:[%s1 + $0x40] sm:$0xf]
      %v325 = vld [vmem:[%s1 + $0x44] sm:$0xf]
      %v326 = vld [vmem:[%s1 + $0x48] sm:$0xf]
      %v327 = vld [vmem:[%s1 + $0x4c] sm:$0xf]
      %v328 = vld [vmem:[%s1 + $0x50] sm:$0xf]
      %v329 = vld [vmem:[%s1 + $0x54] sm:$0xf]
      %v330 = vld [vmem:[%s1 + $0x58] sm:$0xf]
      %v331 = vld [vmem:[%s1 + $0x5c] sm:$0xf]
      %v356 = vunpack.c.l.b16 %v308
      %v357 = vunpack.c.l.b16 %v309
      %v358 = vunpack.c.l.b16 %v310
      %v359 = vunpack.c.l.b16 %v311
      %v360 = vunpack.c.l.b16 %v312
      %v361 = vunpack.c.l.b16 %v313
      %v362 = vunpack.c.l.b16 %v314
      %v363 = vunpack.c.l.b16 %v315
      %v364 = vunpack.c.l.b16 %v316
      %v365 = vunpack.c.l.b16 %v317
      %v366 = vunpack.c.l.b16 %v318
      %v367 = vunpack.c.l.b16 %v319
      %v368 = vunpack.c.l.b16 %v320
      %v369 = vunpack.c.l.b16 %v321
      %v370 = vunpack.c.l.b16 %v322
      %v371 = vunpack.c.l.b16 %v323
      %v372 = vunpack.c.l.b16 %v324
      %v373 = vunpack.c.l.b16 %v325
      %v374 = vunpack.c.l.b16 %v326
      %v375 = vunpack.c.l.b16 %v327
      %v376 = vunpack.c.l.b16 %v328
      %v377 = vunpack.c.l.b16 %v329
      %v378 = vunpack.c.l.b16 %v330
      %v379 = vunpack.c.l.b16 %v331
      %v380 = vpack.c.b16 %v357, %v356
      %v381 = vpack.c.b16 %v359, %v358
      %v382 = vpack.c.b16 %v361, %v360
      %v383 = vpack.c.b16 %v363, %v362
      %v384 = vpack.c.b16 %v365, %v364
      %v385 = vpack.c.b16 %v367, %v366
      %v386 = vpack.c.b16 %v369, %v368
      %v387 = vpack.c.b16 %v371, %v370
      %v388 = vpack.c.b16 %v373, %v372
      %v389 = vpack.c.b16 %v375, %v374
      %v390 = vpack.c.b16 %v377, %v376
      %v391 = vpack.c.b16 %v379, %v378
      %v405 = vsel %vm287, %v307, 0
      %407 = vmatprep.subr.bf16.mxu0 0
      %408 = vmatpush1.bf16.msra.mxu0 %v380
      %409 = vmatprep.subr.bf16.mxu0 0
      %410 = vmatpush1.bf16.msra.mxu0 %v381
      %411 = vmatprep.subr.bf16.mxu0 0
      %412 = vmatpush1.bf16.msra.mxu0 %v382
      %413 = vmatprep.subr.bf16.mxu0 0
      %414 = vmatpush1.bf16.msra.mxu0 %v383
      %415 = vmatprep.subr.bf16.mxu0 0
      %416 = vmatpush1.bf16.msra.mxu0 %v384
      %417 = vmatprep.subr.bf16.mxu0 0
      %418 = vmatpush1.bf16.msra.mxu0 %v385
      %419 = vmatprep.subr.bf16.mxu0 0
      %420 = vmatpush1.bf16.msra.mxu0 %v386
      %421 = vmatprep.subr.bf16.mxu0 0
      %422 = vmatpush1.bf16.msra.mxu0 %v387
      %423 = vmatprep.subr.bf16.mxu0 0
      %424 = vmatpush1.bf16.msra.mxu0 %v388
      %425 = vmatprep.subr.bf16.mxu0 0
      %426 = vmatpush1.bf16.msra.mxu0 %v389
      %427 = vmatprep.subr.bf16.mxu0 0
      %428 = vmatpush1.bf16.msra.mxu0 %v390
      %429 = vmatprep.subr.bf16.mxu0 0
      %430 = vmatpush1.bf16.msra.mxu0 %v391
      %431 = vmatprep.subr.bf16.mxu0 0
      %432 = vmatpush1.bf16.msra.mxu0 0
      %433 = vmatprep.subr.bf16.mxu0 0
      %434 = vmatpush1.bf16.msra.mxu0 0
      %435 = vmatprep.subr.bf16.mxu0 0
      %436 = vmatpush1.bf16.msra.mxu0 0
      %437 = vmatprep.subr.bf16.mxu0 0
      %438 = vmatpush1.bf16.msra.mxu0 0
      %439 = vmatprep.mubr.bf16.mxu0 %v405
      %440 = vmatmul.mubr.bf16.gmra.mrb[0].mxu0 %v306
      %v441 = vpop.f32.mrb[0].mxu0
      %v442 = vadd.f32 0.0, %v441
      %v443 = vpop.f32.mrb[0].mxu0
      %v444 = vpop.f32.mrb[0].mxu0
      %v445 = vadd.f32 0.0, %v444
      %v446 = vpop.f32.mrb[0].mxu0
      %447 = vdwg.mxu0
      %v448 = vld [vmem:[%s2] sm:$0x1]
      %v450 = vlaneseq
      %v451 = vshrl.u32 %v450, 7
      %v452 = vsub.s32 0, %v451
      %v453 = vrot.slane %v448, %v452
      %v455 = vmul.f32 %v442, %v453
      %v456 = vmul.f32 %v445, %v453
      %v457 = vld [vmem:[%s3] sm:$0x1]
      %v459 = vlaneseq
      %v460 = vshrl.u32 %v459, 7
      %v461 = vsub.s32 0, %v460
      %v462 = vrot.slane %v457, %v461
      %v464 = vadd.f32 %v455, %v462
      %v465 = vadd.f32 %v456, %v462
      %v466 = vmax.f32 %v464, 0.0
      %v467 = vmax.f32 %v465, 0.0
      %468 = vst [vmem:[#allocation3 + $0x1] sm:$0xff] %v466
      %469 = vst [vmem:[#allocation3 + $0x9] sm:$0xff] %v467
      %v470 = vld [vmem:[#allocation3] sm:$0xff]
      %v471 = vld [vmem:[#allocation3 + $0x8] sm:$0xff]
      %v472 = vld [vmem:[#allocation3 + $0x1] sm:$0xff]
      %v473 = vld [vmem:[#allocation3 + $0x9] sm:$0xff]
      %v474 = vld [vmem:[#allocation3 + $0x2] sm:$0xff]
      %v475 = vld [vmem:[#allocation3 + $0xa] sm:$0xff]
      %v476 = vpack.c.bf16 %v471, %v470
      %v477 = vpack.c.bf16 %v473, %v472
      %v478 = vpack.c.bf16 %v475, %v474
      %v479 = vld [vmem:[%s4] sm:$0xf]
      %v480 = vld [vmem:[%s4 + $0x4] sm:$0xf]
      %v481 = vld [vmem:[%s4 + $0x8] sm:$0xf]
      %v482 = vld [vmem:[%s4 + $0xc] sm:$0xf]
      %v483 = vld [vmem:[%s4 + $0x10] sm:$0xf]
      %v484 = vld [vmem:[%s4 + $0x14] sm:$0xf]
      %v485 = vld [vmem:[%s4 + $0x18] sm:$0xf]
      %v486 = vld [vmem:[%s4 + $0x1c] sm:$0xf]
      %v487 = vld [vmem:[%s4 + $0x20] sm:$0xf]
      %v488 = vld [vmem:[%s4 + $0x24] sm:$0xf]
      %v489 = vld [vmem:[%s4 + $0x28] sm:$0xf]
      %v490 = vld [vmem:[%s4 + $0x2c] sm:$0xf]
      %v491 = vld [vmem:[%s4 + $0x30] sm:$0xf]
      %v492 = vld [vmem:[%s4 + $0x34] sm:$0xf]
      %v493 = vld [vmem:[%s4 + $0x38] sm:$0xf]
      %v494 = vld [vmem:[%s4 + $0x3c] sm:$0xf]
      %v495 = vld [vmem:[%s4 + $0x40] sm:$0xf]
      %v496 = vld [vmem:[%s4 + $0x44] sm:$0xf]
      %v497 = vld [vmem:[%s4 + $0x48] sm:$0xf]
      %v498 = vld [vmem:[%s4 + $0x4c] sm:$0xf]
      %v499 = vld [vmem:[%s4 + $0x50] sm:$0xf]
      %v500 = vld [vmem:[%s4 + $0x54] sm:$0xf]
      %v501 = vld [vmem:[%s4 + $0x58] sm:$0xf]
      %v502 = vld [vmem:[%s4 + $0x5c] sm:$0xf]
      %v503 = vld [vmem:[%s4 + $0x60] sm:$0xf]
      %v504 = vld [vmem:[%s4 + $0x64] sm:$0xf]
      %v505 = vld [vmem:[%s4 + $0x68] sm:$0xf]
      %v506 = vld [vmem:[%s4 + $0x6c] sm:$0xf]
      %v507 = vld [vmem:[%s4 + $0x70] sm:$0xf]
      %v508 = vld [vmem:[%s4 + $0x74] sm:$0xf]
      %v509 = vld [vmem:[%s4 + $0x78] sm:$0xf]
      %v510 = vld [vmem:[%s4 + $0x7c] sm:$0xf]
      %v511 = vld [vmem:[%s4 + $0x80] sm:$0xf]
      %v512 = vld [vmem:[%s4 + $0x84] sm:$0xf]
      %v513 = vld [vmem:[%s4 + $0x88] sm:$0xf]
      %v514 = vld [vmem:[%s4 + $0x8c] sm:$0xf]
      %v515 = vld [vmem:[%s4 + $0x90] sm:$0xf]
      %v516 = vld [vmem:[%s4 + $0x94] sm:$0xf]
      %v517 = vld [vmem:[%s4 + $0x98] sm:$0xf]
      %v518 = vld [vmem:[%s4 + $0x9c] sm:$0xf]
      %v519 = vld [vmem:[%s4 + $0xa0] sm:$0xf]
      %v520 = vld [vmem:[%s4 + $0xa4] sm:$0xf]
      %v521 = vld [vmem:[%s4 + $0xa8] sm:$0xf]
      %v522 = vld [vmem:[%s4 + $0xac] sm:$0xf]
      %v523 = vld [vmem:[%s4 + $0xb0] sm:$0xf]
      %v524 = vld [vmem:[%s4 + $0xb4] sm:$0xf]
      %v525 = vld [vmem:[%s4 + $0xb8] sm:$0xf]
      %v526 = vld [vmem:[%s4 + $0xbc] sm:$0xf]
      %v575 = vunpack.c.l.b16 %v479
      %v576 = vunpack.c.l.b16 %v480
      %v577 = vunpack.c.l.b16 %v481
      %v578 = vunpack.c.l.b16 %v482
      %v579 = vunpack.c.l.b16 %v483
      %v580 = vunpack.c.l.b16 %v484
      %v581 = vunpack.c.l.b16 %v485
      %v582 = vunpack.c.l.b16 %v486
      %v583 = vunpack.c.l.b16 %v487
      %v584 = vunpack.c.l.b16 %v488
      %v585 = vunpack.c.l.b16 %v489
      %v586 = vunpack.c.l.b16 %v490
      %v587 = vunpack.c.l.b16 %v491
      %v588 = vunpack.c.l.b16 %v492
      %v589 = vunpack.c.l.b16 %v493
      %v590 = vunpack.c.l.b16 %v494
      %v591 = vunpack.c.l.b16 %v495
      %v592 = vunpack.c.l.b16 %v496
      %v593 = vunpack.c.l.b16 %v497
      %v594 = vunpack.c.l.b16 %v498
      %v595 = vunpack.c.l.b16 %v499
      %v596 = vunpack.c.l.b16 %v500
      %v597 = vunpack.c.l.b16 %v501
      %v598 = vunpack.c.l.b16 %v502
      %v599 = vunpack.c.l.b16 %v503
      %v600 = vunpack.c.l.b16 %v504
      %v601 = vunpack.c.l.b16 %v505
      %v602 = vunpack.c.l.b16 %v506
      %v603 = vunpack.c.l.b16 %v507
      %v604 = vunpack.c.l.b16 %v508
      %v605 = vunpack.c.l.b16 %v509
      %v606 = vunpack.c.l.b16 %v510
      %v607 = vunpack.c.l.b16 %v511
      %v608 = vunpack.c.l.b16 %v512
      %v609 = vunpack.c.l.b16 %v513
      %v610 = vunpack.c.l.b16 %v514
      %v611 = vunpack.c.l.b16 %v515
      %v612 = vunpack.c.l.b16 %v516
      %v613 = vunpack.c.l.b16 %v517
      %v614 = vunpack.c.l.b16 %v518
      %v615 = vunpack.c.l.b16 %v519
      %v616 = vunpack.c.l.b16 %v520
      %v617 = vunpack.c.l.b16 %v521
      %v618 = vunpack.c.l.b16 %v522
      %v619 = vunpack.c.l.b16 %v523
      %v620 = vunpack.c.l.b16 %v524
      %v621 = vunpack.c.l.b16 %v525
      %v622 = vunpack.c.l.b16 %v526
      %v623 = vpack.c.b16 %v576, %v575
      %v624 = vpack.c.b16 %v578, %v577
      %v625 = vpack.c.b16 %v580, %v579
      %v626 = vpack.c.b16 %v582, %v581
      %v627 = vpack.c.b16 %v584, %v583
      %v628 = vpack.c.b16 %v586, %v585
      %v629 = vpack.c.b16 %v588, %v587
      %v630 = vpack.c.b16 %v590, %v589
      %v631 = vpack.c.b16 %v592, %v591
      %v632 = vpack.c.b16 %v594, %v593
      %v633 = vpack.c.b16 %v596, %v595
      %v634 = vpack.c.b16 %v598, %v597
      %v635 = vpack.c.b16 %v600, %v599
      %v636 = vpack.c.b16 %v602, %v601
      %v637 = vpack.c.b16 %v604, %v603
      %v638 = vpack.c.b16 %v606, %v605
      %v639 = vpack.c.b16 %v608, %v607
      %v640 = vpack.c.b16 %v610, %v609
      %v641 = vpack.c.b16 %v612, %v611
      %v642 = vpack.c.b16 %v614, %v613
      %v643 = vpack.c.b16 %v616, %v615
      %v644 = vpack.c.b16 %v618, %v617
      %v645 = vpack.c.b16 %v620, %v619
      %v646 = vpack.c.b16 %v622, %v621
      %671 = vmatprep.subr.bf16.mxu0 0
      %672 = vmatpush1.bf16.msra.mxu0 %v623
      %673 = vmatprep.subr.bf16.mxu0 0
      %674 = vmatpush1.bf16.msra.mxu0 %v624
      %675 = vmatprep.subr.bf16.mxu0 0
      %676 = vmatpush1.bf16.msra.mxu0 %v625
      %677 = vmatprep.subr.bf16.mxu0 0
      %678 = vmatpush1.bf16.msra.mxu0 %v626
      %679 = vmatprep.subr.bf16.mxu0 0
      %680 = vmatpush1.bf16.msra.mxu0 %v627
      %681 = vmatprep.subr.bf16.mxu0 0
      %682 = vmatpush1.bf16.msra.mxu0 %v628
      %683 = vmatprep.subr.bf16.mxu0 0
      %684 = vmatpush1.bf16.msra.mxu0 %v629
      %685 = vmatprep.subr.bf16.mxu0 0
      %686 = vmatpush1.bf16.msra.mxu0 %v630
      %687 = vmatprep.subr.bf16.mxu0 0
      %688 = vmatpush1.bf16.msra.mxu0 %v631
      %689 = vmatprep.subr.bf16.mxu0 0
      %690 = vmatpush1.bf16.msra.mxu0 %v632
      %691 = vmatprep.subr.bf16.mxu0 0
      %692 = vmatpush1.bf16.msra.mxu0 %v633
      %693 = vmatprep.subr.bf16.mxu0 0
      %694 = vmatpush1.bf16.msra.mxu0 %v634
      %695 = vmatprep.subr.bf16.mxu0 0
      %696 = vmatpush1.bf16.msra.mxu0 %v635
      %697 = vmatprep.subr.bf16.mxu0 0
      %698 = vmatpush1.bf16.msra.mxu0 %v636
      %699 = vmatprep.subr.bf16.mxu0 0
      %700 = vmatpush1.bf16.msra.mxu0 %v637
      %701 = vmatprep.subr.bf16.mxu0 0
      %702 = vmatpush1.bf16.msra.mxu0 %v638
      %703 = vmatprep.mubr.bf16.mxu0 %v477
      %704 = vmatmul.mubr.bf16.gmra.mrb[0].mxu0 %v476
      %v705 = vpop.f32.mrb[0].mxu0
      %v706 = vadd.f32 0.0, %v705
      %v707 = vpop.f32.mrb[0].mxu0
      %v708 = vpop.f32.mrb[0].mxu0
      %v709 = vadd.f32 0.0, %v708
      %v710 = vpop.f32.mrb[0].mxu0
      %711 = vdwg.mxu0
      %712 = vmatprep.subr.bf16.mxu0 0
      %713 = vmatpush1.bf16.msra.mxu0 %v639
      %714 = vmatprep.subr.bf16.mxu0 0
      %715 = vmatpush1.bf16.msra.mxu0 %v640
      %716 = vmatprep.subr.bf16.mxu0 0
      %717 = vmatpush1.bf16.msra.mxu0 %v641
      %718 = vmatprep.subr.bf16.mxu0 0
      %719 = vmatpush1.bf16.msra.mxu0 %v642
      %720 = vmatprep.subr.bf16.mxu0 0
      %721 = vmatpush1.bf16.msra.mxu0 %v643
      %722 = vmatprep.subr.bf16.mxu0 0
      %723 = vmatpush1.bf16.msra.mxu0 %v644
      %724 = vmatprep.subr.bf16.mxu0 0
      %725 = vmatpush1.bf16.msra.mxu0 %v645
      %726 = vmatprep.subr.bf16.mxu0 0
      %727 = vmatpush1.bf16.msra.mxu0 %v646
      %728 = vmatprep.subr.bf16.mxu0 0
      %729 = vmatpush1.bf16.msra.mxu0 0
      %730 = vmatprep.subr.bf16.mxu0 0
      %731 = vmatpush1.bf16.msra.mxu0 0
      %732 = vmatprep.subr.bf16.mxu0 0
      %733 = vmatpush1.bf16.msra.mxu0 0
      %734 = vmatprep.subr.bf16.mxu0 0
      %735 = vmatpush1.bf16.msra.mxu0 0
      %736 = vmatprep.subr.bf16.mxu0 0
      %737 = vmatpush1.bf16.msra.mxu0 0
      %738 = vmatprep.subr.bf16.mxu0 0
      %739 = vmatpush1.bf16.msra.mxu0 0
      %740 = vmatprep.subr.bf16.mxu0 0
      %741 = vmatpush1.bf16.msra.mxu0 0
      %742 = vmatprep.subr.bf16.mxu0 0
      %743 = vmatpush1.bf16.msra.mxu0 0
      %744 = vmatprep.mubr.bf16.mxu0 0
      %745 = vmatmul.mubr.bf16.gmra.mrb[0].mxu0 %v478
      %v746 = vpop.f32.mrb[0].mxu0
      %v747 = vadd.f32 %v706, %v746
      %v748 = vpop.f32.mrb[0].mxu0
      %v749 = vpop.f32.mrb[0].mxu0
      %v750 = vadd.f32 %v709, %v749
      %v751 = vpop.f32.mrb[0].mxu0
      %752 = vdwg.mxu0
      %v753 = vld [vmem:[%s5] sm:$0x1]
      %v755 = vlaneseq
      %v756 = vshrl.u32 %v755, 7
      %v757 = vsub.s32 0, %v756
      %v758 = vrot.slane %v753, %v757
      %v760 = vmul.f32 %v747, %v758
      %v761 = vmul.f32 %v750, %v758
      %v762 = vld [vmem:[%s6] sm:$0x1]
      %v764 = vlaneseq
      %v765 = vshrl.u32 %v764, 7
      %v766 = vsub.s32 0, %v765
      %v767 = vrot.slane %v762, %v766
      %v769 = vadd.f32 %v760, %v767
      %v770 = vadd.f32 %v761, %v767
      %v771 = vmax.f32 %v769, 0.0
      %v772 = vmax.f32 %v770, 0.0
      %773 = vst [vmem:[%s278] sm:$0xff] %v771
      %774 = vst [vmem:[%s278 + $0x8] sm:$0xff] %v772
      %p775 = scmp.lt.s32.totalorder %s18, 1
      %s776 = scalar_select %p775, %s18, 1
      %s777 = smul.addr %s776, 2
      %s778 = smul.addr %s777, 8
      %s779 = scalar_lea.vmem %s7, %s778
      // Predicated region
      $region49: #{double_conv.1} parent=47 // pred_check
        %p780 = pneg %p188
      $region50: #{double_conv.1} parent=47 // pred_check_branch
        %782 = sbr.rel (%p780) target = $region52
      $region51: #{double_conv.1} parent=47 // pred_region
        _
      $region52: #{double_conv.1} parent=47 // pred_fallthru
        _
    $region48: #{double_conv.1} parent=5 // pred_fallthru
      _
    %p783 = scmp.le.s32.totalorder 2, %s13
    // Predicated region
    $region53: #{double_conv.1} parent=5 // pred_check
      %p784 = pneg %p783
    $region54: #{double_conv.1} parent=5 // pred_check_branch
      %786 = sbr.rel (%p784) target = $region56
    $region55: #{double_conv.1} parent=5 // pred_region
      %s787 = ssub.s32 %s13, 2
      // Predicated region
      $region57: #{double_conv.1} parent=55 // pred_check
        %p788 = pneg %p194
      $region58: #{double_conv.1} parent=55 // pred_check_branch
        %790 = sbr.rel (%p788) target = $region60
      $region59: #{double_conv.1} parent=55 // pred_region
        %p791 = scmp.lt.s32.totalorder %s19, 1
        %s792 = scalar_select %p791, %s19, 1
        %s793 = smul.addr %s792, 2
        %s794 = smul.addr %s793, 8
        %s795 = scalar_lea.vmem %s7, %s794
      $region60: #{double_conv.1} parent=55 // pred_fallthru
        _
    $region56: #{double_conv.1} parent=5 // pred_fallthru
      _
  $region6: #{double_conv.1} parent=0 // loop_footer
    %s17 = sadd.s32 1, %s13
  $region7: #{double_conv.1} parent=0 // loop_footer_branch
    %12 = sbr.rel target = $region3
  $region8: #{double_conv.1} parent=0 // loop_exit
    _

</llo_original>
